<compile_context>
chip_gen: v5e
topology: v5e:2x2
jax: 0.10.0
libtpu: 0.0.40
codegen_flags: <defaults>
</compile_context>

<pallas_src>
import math

import jax
import jax.numpy as jnp
from jax.experimental import pallas as pl
from jax.experimental.pallas import tpu as pltpu


def _round_up(x, m):
    return (x + m - 1) // m * m


def _linear_kernel(x_ref, w_ref, b_ref, o_ref):
    # x_ref: (TM, TK) bf16, w_ref: (TK, TN) bf16, b_ref: (1, TN) f32,
    # o_ref: (TM, TN) f32 — doubles as the accumulator (resident across k).
    k = pl.program_id(2)

    @pl.when(k == 0)
    def _init():
        o_ref[...] = jnp.zeros_like(o_ref)

    o_ref[...] += jnp.dot(x_ref[...], w_ref[...],
                          preferred_element_type=jnp.float32)

    @pl.when(k == pl.num_programs(2) - 1)
    def _finalize():
        o_ref[...] += b_ref[...]        # bias add in f32


def prepare_fc_params(weight, bias, *, tn=512, tk=512,
                      stream_dtype=jnp.bfloat16):
    """One-time prep of nn.Linear params for the kernel (NOT per-call):
    transpose + zero-pad the weight to (K_pad, N_pad) in bf16 and pad the
    bias to (1, N_pad) in f32.  Padded K rows contribute 0 to the dot;
    padded N columns carry zero weight/bias and are sliced off later."""
    N, K = weight.shape
    TN = min(tn, _round_up(N, 128))     # lane-dense output columns
    TK = min(tk, _round_up(K, 128))
    N_pad = _round_up(N, TN)
    K_pad = _round_up(K, TK)

    w_t = jnp.zeros((K_pad, N_pad), stream_dtype).at[:K, :N].set(
        weight.T.astype(stream_dtype))
    b_p = jnp.zeros((1, N_pad), jnp.float32).at[0, :N].set(
        bias.astype(jnp.float32))
    return w_t, b_p, (N, K, TN, TK)


def linear_forward(x, w_t, b_p, meta, *, tm_max=128,
                   stream_dtype=jnp.bfloat16):
    """out = x @ weight.T + bias  (PyTorch nn.Linear convention).

    x:    (..., in_features)   f32
    w_t:  (K_pad, N_pad)       bf16  (prepared once by prepare_fc_params)
    b_p:  (1, N_pad)           f32
    returns (..., out_features) f32
    """
    N, K, TN, TK = meta
    orig_shape = x.shape
    assert orig_shape[-1] == K, "input feature dim mismatch"

    x2 = x.reshape(-1, K)
    M = x2.shape[0]
    K_pad, N_pad = w_t.shape

    # bf16 tiles: second-to-last block dim must be a multiple of 16.
    TM = min(tm_max, _round_up(M, 16))
    M_pad = _round_up(M, TM)

    # Only the (tiny) activation is padded/cast on the per-call path.
    x_p = jnp.zeros((M_pad, K_pad), stream_dtype).at[:M, :K].set(
        x2.astype(stream_dtype))

    grid = (M_pad // TM, N_pad // TN, K_pad // TK)

    cost = pl.CostEstimate(
        flops=2 * M_pad * K_pad * N_pad,
        transcendentals=0,
        bytes_accessed=(x_p.size * x_p.dtype.itemsize
                        + w_t.size * w_t.dtype.itemsize
                        + b_p.size * 4
                        + M_pad * N_pad * 4),
    )

    out_p = pl.pallas_call(
        _linear_kernel,
        out_shape=jax.ShapeDtypeStruct((M_pad, N_pad), jnp.float32),
        grid_spec=pltpu.PrefetchScalarGridSpec(
            num_scalar_prefetch=0,
            grid=grid,
            in_specs=[
                pl.BlockSpec((TM, TK), lambda m, n, k: (m, k)),   # x tile
                pl.BlockSpec((TK, TN), lambda m, n, k: (k, n)),   # W^T tile
                pl.BlockSpec((1, TN), lambda m, n, k: (0, n)),    # bias tile
            ],
            out_specs=pl.BlockSpec((TM, TN), lambda m, n, k: (m, n)),
        ),
        compiler_params=pltpu.CompilerParams(
            dimension_semantics=("parallel", "parallel", "arbitrary")),
        cost_estimate=cost,
    )(x_p, w_t, b_p)

    out = out_p[:M, :N]
    return out.reshape(*orig_shape[:-1], N)


def init_fc_params(key, in_features, out_features):
    # Mirrors nn.Linear default init: U(-1/sqrt(fan_in), 1/sqrt(fan_in)).
    bound = 1.0 / math.sqrt(in_features)
    kw, kb = jax.random.split(key)
    weight = jax.random.uniform(
        kw, (out_features, in_features), jnp.float32,
        minval=-bound, maxval=bound)
    bias = jax.random.uniform(
        kb, (out_features,), jnp.float32, minval=-bound, maxval=bound)
    return weight, bias


if __name__ == "__main__":
    key = jax.random.PRNGKey(0)
    k_x, k_p = jax.random.split(key)

    batch = 4
    in_features, out_features = 1024, 1000

    x = jax.random.normal(k_x, (batch, in_features), jnp.float32)
    weight, bias = init_fc_params(k_p, in_features, out_features)

    # One-time parameter preparation (transpose / pad / bf16 cast) — this is
    # deliberately OUTSIDE the per-call forward path.
    w_t, b_p, meta = prepare_fc_params(weight, bias)

    fwd = jax.jit(lambda xx: linear_forward(xx, w_t, b_p, meta))
    out = jax.block_until_ready(fwd(x))

    # Pure-JAX f32 reference (same convention as the PyTorch module's fc).
    ref = jnp.matmul(x, weight.T) + bias
    assert out.shape == (batch, out_features)
    max_err = float(jnp.max(jnp.abs(out - ref)))
    # bf16 input rounding with f32 accumulation => ~1e-2-level error budget.
    assert max_err < 5e-2, max_err

    print("KERNEL_OK")
</pallas_src>

<mosaic_0001>
module attributes {stable_mosaic.version = 11 : i64} {
  func.func @_linear_kernel(%arg0: i32, %arg1: i32, %arg2: i32, %arg3: memref<16x512xbf16, #tpu.memory_space<vmem>>, %arg4: memref<512x512xbf16, #tpu.memory_space<vmem>>, %arg5: memref<1x512xf32, #tpu.memory_space<vmem>>, %arg6: memref<16x512xf32, #tpu.memory_space<vmem>>) attributes {dimension_semantics = [#tpu.dimension_semantics<parallel>, #tpu.dimension_semantics<parallel>, #tpu.dimension_semantics<arbitrary>], iteration_bounds = array<i64: 1, 2, 2>, scalar_prefetch = 0 : i64, scratch_operands = 0 : i64, tpu.core_type = #tpu.core_type<tc>, window_params = [{transform_indices = @transform_0, window_bounds = array<i64: 16, 512>}, {transform_indices = @transform_1, window_bounds = array<i64: 512, 512>}, {transform_indices = @transform_2, window_bounds = array<i64: 1, 512>}, {transform_indices = @transform_3, window_bounds = array<i64: 16, 512>}]} {
    %c0_i32 = arith.constant 0 : i32
    %0 = arith.cmpi eq, %arg2, %c0_i32 : i32
    %1 = arith.extui %0 : i1 to i32
    %c0_i32_0 = arith.constant 0 : i32
    %2 = arith.cmpi ne, %1, %c0_i32_0 : i32
    scf.if %2 {
      %cst_9 = arith.constant 0.000000e+00 : f32
      %12 = vector.broadcast %cst_9 : f32 to vector<16x512xf32>
      %c0_10 = arith.constant 0 : index
      %c0_11 = arith.constant 0 : index
      %13 = vector.load %arg6[%c0_10, %c0_11] : memref<16x512xf32, #tpu.memory_space<vmem>>, vector<16x512xf32>
      tpu.vector_store %arg6[%c0_10, %c0_11], %12 {strides = array<i32>} : memref<16x512xf32, #tpu.memory_space<vmem>>, vector<16x512xf32>,
    } else {
    }
    %c0 = arith.constant 0 : index
    %c0_1 = arith.constant 0 : index
    %3 = vector.load %arg6[%c0, %c0_1] : memref<16x512xf32, #tpu.memory_space<vmem>>, vector<16x512xf32>
    %c0_2 = arith.constant 0 : index
    %c0_3 = arith.constant 0 : index
    %4 = vector.load %arg3[%c0_2, %c0_3] : memref<16x512xbf16, #tpu.memory_space<vmem>>, vector<16x512xbf16>
    %c0_4 = arith.constant 0 : index
    %c0_5 = arith.constant 0 : index
    %5 = vector.load %arg4[%c0_4, %c0_5] : memref<512x512xbf16, #tpu.memory_space<vmem>>, vector<512x512xbf16>
    %cst = arith.constant dense<0.000000e+00> : vector<16x512xf32>
    %6 = tpu.matmul %4, %5, %cst {dimension_numbers = #tpu.dot_dimension_numbers<[1], [0], [0], [1], [0, 0, 1, 1], [], []>} : vector<16x512xbf16>, vector<512x512xbf16>, vector<16x512xf32> -> vector<16x512xf32>
    %7 = arith.addf %3, %6 : vector<16x512xf32>
    %c0_6 = arith.constant 0 : index
    %c0_7 = arith.constant 0 : index
    %8 = vector.load %arg6[%c0_6, %c0_7] : memref<16x512xf32, #tpu.memory_space<vmem>>, vector<16x512xf32>
    tpu.vector_store %arg6[%c0_6, %c0_7], %7 {strides = array<i32>} : memref<16x512xf32, #tpu.memory_space<vmem>>, vector<16x512xf32>,
    %c1_i32 = arith.constant 1 : i32
    %9 = arith.cmpi eq, %arg2, %c1_i32 : i32
    %10 = arith.extui %9 : i1 to i32
    %c0_i32_8 = arith.constant 0 : i32
    %11 = arith.cmpi ne, %10, %c0_i32_8 : i32
    scf.if %11 {
      %c0_9 = arith.constant 0 : index
      %c0_10 = arith.constant 0 : index
      %12 = vector.load %arg6[%c0_9, %c0_10] : memref<16x512xf32, #tpu.memory_space<vmem>>, vector<16x512xf32>
      %c0_11 = arith.constant 0 : index
      %c0_12 = arith.constant 0 : index
      %13 = vector.load %arg5[%c0_11, %c0_12] : memref<1x512xf32, #tpu.memory_space<vmem>>, vector<1x512xf32>
      %14 = vector.broadcast %13 : vector<1x512xf32> to vector<16x512xf32>
      %15 = arith.addf %12, %14 : vector<16x512xf32>
      %c0_13 = arith.constant 0 : index
      %c0_14 = arith.constant 0 : index
      %16 = vector.load %arg6[%c0_13, %c0_14] : memref<16x512xf32, #tpu.memory_space<vmem>>, vector<16x512xf32>
      tpu.vector_store %arg6[%c0_13, %c0_14], %15 {strides = array<i32>} : memref<16x512xf32, #tpu.memory_space<vmem>>, vector<16x512xf32>,
    } else {
    }
    return
  }
  func.func @transform_0(%arg0: i32, %arg1: i32, %arg2: i32) -> (i32, i32) {
    %c0_i32 = arith.constant 0 : i32
    return %arg0, %arg2 : i32, i32
  }
  func.func @transform_1(%arg0: i32, %arg1: i32, %arg2: i32) -> (i32, i32) {
    %c0_i32 = arith.constant 0 : i32
    return %arg2, %arg1 : i32, i32
  }
  func.func @transform_2(%arg0: i32, %arg1: i32, %arg2: i32) -> (i32, i32) {
    %c0_i32 = arith.constant 0 : i32
    %c0_i32_0 = arith.constant 0 : i32
    return %c0_i32, %arg1 : i32, i32
  }
  func.func @transform_3(%arg0: i32, %arg1: i32, %arg2: i32) -> (i32, i32) {
    %c0_i32 = arith.constant 0 : i32
    return %arg0, %arg1 : i32, i32
  }
}

</mosaic_0001>

<llo_original>
// kernel: _lambda_.1
$region0: #{_lambda_.1}
  #allocation0 [shape = 'u32[]', space=smem, size = 0x4, offset = 0x4, fixed_abs, tag = 'smem constant byte address 0x4 - core index']
  #allocation1 [shape = 'u32[72,128]{1,0:T(1,128)}', space=vmem, size = 0x9000, scoped, tag = 'internal scratch']
  %s0 = inlined_call_operand.vmem [shape: bf16[16,1024], index: 0, kind: input, shape index: {}]
  %s1 = inlined_call_operand.hbm [shape: bf16[1024,1024], index: 1, kind: input, shape index: {}]
  %s2 = inlined_call_operand.hbm [shape: f32[1,1024], index: 2, kind: input, shape index: {}]
  %s3 = inlined_call_operand.vmem [shape: f32[16,1024], index: 3, kind: output, shape index: {}]
  %s4 = sld [smem:[#allocation0]]
  $region103: #{_lambda_.1} parent=0
    _
  %s6 = ssub.s32 1, %s4
  %s7 = scalar_select 0, %s6, %s4
  $region1: #{_lambda_.1} parent=0
    #allocation2 [shape = 'u8[32768]{0}', space=vmem, size = 0x8000, scoped, tag = 'input window, operand 0']
    #allocation3 [shape = 'u8[1048576]{0}', space=vmem, size = 0x100000, scoped, tag = 'input window, operand 1']
    #allocation4 [shape = 's32[2]{0}', space=sflag, size = 0x8, scoped, tag = 'scoped memory for _lambda_.1']
    #allocation5 [shape = 'u8[4096]{0}', space=vmem, size = 0x1000, scoped, tag = 'input window, operand 2']
    #allocation6 [shape = 's32[2]{0}', space=sflag, size = 0x8, scoped, tag = 'scoped memory for _lambda_.1']
    #allocation7 [shape = 'u8[65536]{0}', space=vmem, size = 0x10000, scoped, tag = 'output window, operand 0']
    %8 = vsyncpa [#allocation4], 0
    %s9 = scalar_lea.sflag [#allocation4], 1
    %10 = vsyncpa %s9, 0
    %11 = vsyncpa [#allocation6], 0
    %s12 = scalar_lea.sflag [#allocation6], 1
    %13 = vsyncpa %s12, 0
    loop: start=0, step=1, limit=6
    $region2: #{_lambda_.1} parent=1 // loop_pre_header
      _
    $region3: #{_lambda_.1} parent=1 // loop_header
      %s15 = sphi 0, %s19
      %p16 = scmp.ge.s32.totalorder %s15, 6
      %s22 = sphi 0, %s41
      %s23 = sphi 0, %s37
      %s24 = sphi 0, %s33
      %s25 = sphi 0, %s22
      %s26 = sphi 0, %s23
      %s27 = sphi 0, %s24
      %s28 = sphi 0, %s25
      %s29 = sphi 0, %s26
      %s30 = sphi 0, %s27
      %s46 = sphi 0, %s48
      %s49 = sphi 0, %s46
      %s50 = sphi 0, %s49
      %s66 = sphi 0, %s50
      %s74 = sphi 0, %s76
      %s77 = sphi 0, %s74
      %s78 = sphi 0, %s77
      %s94 = sphi 0, %s78
      %s100 = sphi 0, %s102
      %s103 = sphi 0, %s100
      %s104 = sphi 0, %s103
      %s120 = sphi 0, %s104
      %s128 = sphi 0, %s130
      %s131 = sphi 0, %s128
      %s132 = sphi 0, %s131
      %s148 = sphi 0, %s132
    $region4: #{_lambda_.1} parent=1 // loop_header_branch
      %18 = sbr.rel (%p16) target = $region8
    $region5: #{_lambda_.1} parent=1 // loop_body
      %s20 = ssub.s32 %s15, 1
      %s21 = ssub.s32 %s15, 2
      %s31 = sadd.s32 1, %s24
      %p32 = scmp.ge.s32.totalorder %s31, 2
      %s33 = scalar_select %p32, 0, %s31
      %s34 = sadd.s32 1, %s23
      %s35 = scalar_select %p32, %s34, %s23
      %p36 = scmp.ge.s32.totalorder %s35, 2
      %s37 = scalar_select %p36, 0, %s35
      %s38 = sadd.s32 1, %s22
      %s39 = scalar_select %p36, %s38, %s22
      %p40 = scmp.ge.s32.totalorder %s39, 1
      %s41 = scalar_select %p40, 0, %s39
      %s42 = ssub.s32 %s22, %s41
      %s43 = ssub.s32 %s24, %s33
      %s44 = sor.u32 %s42, %s43
      %p45 = scmp.eq.s32.totalorder %s44, 0
      %s47 = sadd.s32 %s46, 1
      %s48 = scalar_select %p45, %s46, %s47
      %p51 = pneg %p45
      %p52 = scmp.eq.s32.totalorder %s15, 3
      %p53 = por %p51, %p52
      %p54 = scmp.ne.s32.totalorder %s46, %s49
      %p55 = scmp.eq.s32.totalorder %s15, 0
      %p56 = por %p54, %p55
      %p57 = scmp.ne.s32.totalorder %s46, %s49
      %p58 = scmp.eq.s32.totalorder %s20, 3
      %p59 = por %p57, %p58
      %p60 = scmp.ne.s32.totalorder %s49, %s50
      %p61 = scmp.eq.s32.totalorder %s20, 0
      %p62 = por %p60, %p61
      %p63 = scmp.ne.s32.totalorder %s49, %s50
      %p64 = scmp.eq.s32.totalorder %s21, 3
      %p65 = por %p63, %p64
      %p67 = scmp.ne.s32.totalorder %s50, %s66
      %p68 = scmp.eq.s32.totalorder %s21, 0
      %p69 = por %p67, %p68
      %s70 = ssub.s32 %s24, %s33
      %s71 = ssub.s32 %s23, %s37
      %s72 = sor.u32 %s70, %s71
      %p73 = scmp.eq.s32.totalorder %s72, 0
      %s75 = sadd.s32 %s74, 1
      %s76 = scalar_select %p73, %s74, %s75
      %p79 = pneg %p73
      %p80 = scmp.eq.s32.totalorder %s15, 3
      %p81 = por %p79, %p80
      %p82 = scmp.ne.s32.totalorder %s74, %s77
      %p83 = scmp.eq.s32.totalorder %s15, 0
      %p84 = por %p82, %p83
      %p85 = scmp.ne.s32.totalorder %s74, %s77
      %p86 = scmp.eq.s32.totalorder %s20, 3
      %p87 = por %p85, %p86
      %p88 = scmp.ne.s32.totalorder %s77, %s78
      %p89 = scmp.eq.s32.totalorder %s20, 0
      %p90 = por %p88, %p89
      %p91 = scmp.ne.s32.totalorder %s77, %s78
      %p92 = scmp.eq.s32.totalorder %s21, 3
      %p93 = por %p91, %p92
      %p95 = scmp.ne.s32.totalorder %s78, %s94
      %p96 = scmp.eq.s32.totalorder %s21, 0
      %p97 = por %p95, %p96
      %s98 = ssub.s32 %s23, %s37
      %p99 = scmp.eq.s32.totalorder %s98, 0
      %s101 = sadd.s32 %s100, 1
      %s102 = scalar_select %p99, %s100, %s101
      %p105 = pneg %p99
      %p106 = scmp.eq.s32.totalorder %s15, 3
      %p107 = por %p105, %p106
      %p108 = scmp.ne.s32.totalorder %s100, %s103
      %p109 = scmp.eq.s32.totalorder %s15, 0
      %p110 = por %p108, %p109
      %p111 = scmp.ne.s32.totalorder %s100, %s103
      %p112 = scmp.eq.s32.totalorder %s20, 3
      %p113 = por %p111, %p112
      %p114 = scmp.ne.s32.totalorder %s103, %s104
      %p115 = scmp.eq.s32.totalorder %s20, 0
      %p116 = por %p114, %p115
      %p117 = scmp.ne.s32.totalorder %s103, %s104
      %p118 = scmp.eq.s32.totalorder %s21, 3
      %p119 = por %p117, %p118
      %p121 = scmp.ne.s32.totalorder %s104, %s120
      %p122 = scmp.eq.s32.totalorder %s21, 0
      %p123 = por %p121, %p122
      %s124 = ssub.s32 %s22, %s41
      %s125 = ssub.s32 %s23, %s37
      %s126 = sor.u32 %s124, %s125
      %p127 = scmp.eq.s32.totalorder %s126, 0
      %s129 = sadd.s32 %s128, 1
      %s130 = scalar_select %p127, %s128, %s129
      %p133 = pneg %p127
      %p134 = scmp.eq.s32.totalorder %s15, 3
      %p135 = por %p133, %p134
      %p136 = scmp.ne.s32.totalorder %s128, %s131
      %p137 = scmp.eq.s32.totalorder %s15, 0
      %p138 = por %p136, %p137
      %p139 = scmp.ne.s32.totalorder %s128, %s131
      %p140 = scmp.eq.s32.totalorder %s20, 3
      %p141 = por %p139, %p140
      %p142 = scmp.ne.s32.totalorder %s131, %s132
      %p143 = scmp.eq.s32.totalorder %s20, 0
      %p144 = por %p142, %p143
      %p145 = scmp.ne.s32.totalorder %s131, %s132
      %p146 = scmp.eq.s32.totalorder %s21, 3
      %p147 = por %p145, %p146
      %p149 = scmp.ne.s32.totalorder %s132, %s148
      %p150 = scmp.eq.s32.totalorder %s21, 0
      %p151 = por %p149, %p150
      %p152 = scmp.le.s32.totalorder 1, %s15
      %p153 = scmp.lt.s32.totalorder %s15, 5
      %p154 = pnand %p152, %p153
      %p155 = pneg %p154
      // Predicated region
      $region9: #{_lambda_.1} parent=5 // pred_check
        _
      $region10: #{_lambda_.1} parent=5 // pred_check_branch
        %157 = sbr.rel (%p154) target = $region12
      $region11: #{_lambda_.1} parent=5 // pred_region
        %s158 = ssub.s32 %s15, 1
      $region12: #{_lambda_.1} parent=5 // pred_fallthru
        _
      %p159 = scmp.lt.s32.totalorder %s15, 4
      // Predicated region
      $region13: #{_lambda_.1} parent=5 // pred_check
        %p160 = pneg %p159
      $region14: #{_lambda_.1} parent=5 // pred_check_branch
        %162 = sbr.rel (%p160) target = $region16
      $region15: #{_lambda_.1} parent=5 // pred_region
        // Predicated region
        $region17: #{_lambda_.1} parent=15 // pred_check
          %p163 = pneg %p56
        $region18: #{_lambda_.1} parent=15 // pred_check_branch
          %165 = sbr.rel (%p163) target = $region20
        $region19: #{_lambda_.1} parent=15 // pred_region
          %s166 = sand.u32 %s46, 1
          %s167 = sand.u32 %s46, 1
          %s168 = smul.addr %s167, 32
          %s169 = scalar_lea.vmem [#allocation2], %s168
          %s170 = smul.u32 2, %s22
          %s171 = smul.u32 4, %s24
          %s172 = smul.addr %s170, 8
          %s173 = sadd.s32 %s171, %s172
          %s174 = smul.addr %s173, 4
          %s175 = scalar_lea.vmem %s0, %s174
          // Predicated region
          $region21: #{_lambda_.1} parent=19 // pred_check
            _
          $region22: #{_lambda_.1} parent=19 // pred_check_branch
            %177 = sbr.rel (0) target = $region24
          $region23: #{_lambda_.1} parent=19 // pred_region
            // Predicated region
            $region25: #{_lambda_.1} parent=23 // pred_check
              _
            $region26: #{_lambda_.1} parent=23 // pred_check_branch
              %179 = sbr.rel (0) target = $region28
            $region27: #{_lambda_.1} parent=23 // pred_region
              loop: start=0, step=1, limit=1
              $region29: #{_lambda_.1} parent=27 // loop_pre_header
                _
              $region30: #{_lambda_.1} parent=27 // loop_header
                %s181 = sphi 0, %s185
                %p182 = scmp.ge.s32.totalorder %s181, 1
                %s186 = sphi %s175, %s175
                %s187 = sphi %s169, %s169
              $region31: #{_lambda_.1} parent=27 // loop_header_branch
                %184 = sbr.rel (%p182) target = $region35
              $region32: #{_lambda_.1} parent=27 // loop_body
                %v188 = vld [vmem:[%s186] sm:$0xff]
                %189 = vst [vmem:[%s187] sm:$0xff] %v188
                %v190 = vld [vmem:[%s186 + $0x8] sm:$0xff]
                %191 = vst [vmem:[%s187 + $0x8] sm:$0xff] %v190
                %v192 = vld [vmem:[%s186 + $0x20] sm:$0xff]
                %193 = vst [vmem:[%s187 + $0x10] sm:$0xff] %v192
                %v194 = vld [vmem:[%s186 + $0x28] sm:$0xff]
                %195 = vst [vmem:[%s187 + $0x18] sm:$0xff] %v194
              $region33: #{_lambda_.1} parent=27 // loop_footer
                %s185 = sadd.s32 1, %s181
              $region34: #{_lambda_.1} parent=27 // loop_footer_branch
                %180 = sbr.rel target = $region30
              $region35: #{_lambda_.1} parent=27 // loop_exit
                _
            $region28: #{_lambda_.1} parent=23 // pred_fallthru
              _
            // Predicated region
            $region36: #{_lambda_.1} parent=23 // pred_check
              _
            $region37: #{_lambda_.1} parent=23 // pred_check_branch
              %197 = sbr.rel target = $region39
            $region38: #{_lambda_.1} parent=23 // pred_region
              _
            $region39: #{_lambda_.1} parent=23 // pred_fallthru
              _
          $region24: #{_lambda_.1} parent=19 // pred_fallthru
            _
          %198 = vnop
        $region20: #{_lambda_.1} parent=15 // pred_fallthru
          _
        // Predicated region
        $region40: #{_lambda_.1} parent=15 // pred_check
          %p199 = pneg %p84
        $region41: #{_lambda_.1} parent=15 // pred_check_branch
          %201 = sbr.rel (%p199) target = $region43
        $region42: #{_lambda_.1} parent=15 // pred_region
          %s202 = sand.u32 %s74, 1
          %s203 = scalar_lea.sflag [#allocation4], %s202
          %s204 = sand.u32 %s74, 1
          %s205 = smul.addr %s204, 1024
          %s206 = scalar_lea.vmem [#allocation3], %s205
          %s207 = smul.u32 64, %s24
          %s208 = smul.u32 4, %s23
          %210 = vsyncadd %s203, 0
          %s211 = smul.addr %s207, 8
          %s212 = sadd.s32 %s208, %s211
          %s213 = smul.addr %s212, 4
          %s214 = scalar_lea.hbm %s1, %s213
          %s215 = sshll.u32 %s214, 4
          %s216 = int_to_ptr.hbm [resolvable:$true] %s215
          %s217 = sshll.u32 %s206, 4
          %s218 = int_to_ptr.vmem [resolvable:$true] %s217
          %223 = dma.hbm_to_vmem [thread:$0]  %s216, 16384, %s218, %s203, 512, 256, 16
        $region43: #{_lambda_.1} parent=15 // pred_fallthru
          _
        // Predicated region
        $region44: #{_lambda_.1} parent=15 // pred_check
          %p224 = pneg %p110
        $region45: #{_lambda_.1} parent=15 // pred_check_branch
          %226 = sbr.rel (%p224) target = $region47
        $region46: #{_lambda_.1} parent=15 // pred_region
          %s227 = sand.u32 %s100, 1
          %s228 = scalar_lea.sflag [#allocation6], %s227
          %s229 = sand.u32 %s100, 1
          %s230 = smul.addr %s229, 4
          %s231 = scalar_lea.vmem [#allocation5], %s230
          %s232 = smul.u32 4, %s23
          %234 = vsyncadd %s228, 0
          %s235 = scalar_lea.hbm %s2, %s232
          %s237 = sshll.u32 %s235, 4
          %s238 = int_to_ptr.hbm [resolvable:$true] %s237
          %s239 = sshll.u32 %s231, 4
          %s240 = int_to_ptr.vmem [resolvable:$true] %s239
          %242 = dma.hbm_to_vmem [thread:$0]  %s238, 64, %s240, %s228
        $region47: #{_lambda_.1} parent=15 // pred_fallthru
          _
      $region16: #{_lambda_.1} parent=5 // pred_fallthru
        _
      %p243 = scmp.le.s32.totalorder 1, %s15
      %p244 = scmp.lt.s32.totalorder %s15, 5
      %p245 = pnand %p243, %p244
      %p246 = pneg %p245
      // Predicated region
      $region48: #{_lambda_.1} parent=5 // pred_check
        _
      $region49: #{_lambda_.1} parent=5 // pred_check_branch
        %248 = sbr.rel (%p245) target = $region51
      $region50: #{_lambda_.1} parent=5 // pred_region
        %s249 = ssub.s32 %s15, 1
        %s250 = sand.u32 %s49, 1
        %s251 = sand.u32 %s49, 1
        %s252 = smul.addr %s251, 32
        %s253 = scalar_lea.vmem [#allocation2], %s252
        // Predicated region
        $region52: #{_lambda_.1} parent=50 // pred_check
          %p254 = pneg %p62
        $region53: #{_lambda_.1} parent=50 // pred_check_branch
          %256 = sbr.rel (%p254) target = $region55
        $region54: #{_lambda_.1} parent=50 // pred_region
          _
        $region55: #{_lambda_.1} parent=50 // pred_fallthru
          _
        %s257 = sand.u32 %s77, 1
        %s258 = scalar_lea.sflag [#allocation4], %s257
        %s259 = sand.u32 %s77, 1
        %s260 = smul.addr %s259, 1024
        %s261 = scalar_lea.vmem [#allocation3], %s260
        // Predicated region
        $region56: #{_lambda_.1} parent=50 // pred_check
          %p262 = pneg %p90
        $region57: #{_lambda_.1} parent=50 // pred_check_branch
          %264 = sbr.rel (%p262) target = $region59
        $region58: #{_lambda_.1} parent=50 // pred_region
          %266 = dma.done %s258, 16384
        $region59: #{_lambda_.1} parent=50 // pred_fallthru
          _
        %s267 = sand.u32 %s103, 1
        %s268 = scalar_lea.sflag [#allocation6], %s267
        %s269 = sand.u32 %s103, 1
        %s270 = smul.addr %s269, 4
        %s271 = scalar_lea.vmem [#allocation5], %s270
        // Predicated region
        $region60: #{_lambda_.1} parent=50 // pred_check
          %p272 = pneg %p116
        $region61: #{_lambda_.1} parent=50 // pred_check_branch
          %274 = sbr.rel (%p272) target = $region63
        $region62: #{_lambda_.1} parent=50 // pred_region
          %276 = dma.done %s268, 64
        $region63: #{_lambda_.1} parent=50 // pred_fallthru
          _
        %s277 = sand.u32 %s49, 1
        %s278 = sand.u32 %s49, 1
        %s279 = smul.addr %s278, 32
        %s280 = scalar_lea.vmem [#allocation2], %s279
        %p281 = pneg %p62
        %p282 = pneg %p59
        %s283 = sand.u32 %s77, 1
        %s284 = scalar_lea.sflag [#allocation4], %s283
        %s285 = sand.u32 %s77, 1
        %s286 = smul.addr %s285, 1024
        %s287 = scalar_lea.vmem [#allocation3], %s286
        %p288 = pneg %p90
        %p289 = pneg %p87
        %s290 = sand.u32 %s103, 1
        %s291 = scalar_lea.sflag [#allocation6], %s290
        %s292 = sand.u32 %s103, 1
        %s293 = smul.addr %s292, 4
        %s294 = scalar_lea.vmem [#allocation5], %s293
        %p295 = pneg %p116
        %p296 = pneg %p113
        %p297 = pneg %p144
        %p298 = pneg %p141
        %s299 = sand.u32 %s131, 1
        %s300 = sand.u32 %s131, 1
        %s301 = smul.addr %s300, 64
        %s302 = scalar_lea.vmem [#allocation7], %s301
        %s303 = smul.u32 2, %s25
        %s304 = smul.u32 4, %s27
        %s305 = smul.u32 64, %s27
        %s306 = smul.u32 4, %s26
        %s307 = smul.u32 4, %s26
        %s308 = smul.u32 2, %s25
        %s309 = smul.u32 4, %s26
        %p310 = scmp.eq.s32.totalorder %s27, 0
        // Predicated region
        $region64: #{_lambda_.1} parent=50 // pred_check
          %p311 = pneg %p310
        $region65: #{_lambda_.1} parent=50 // pred_check_branch
          %313 = sbr.rel (%p311) target = $region67
        $region66: #{_lambda_.1} parent=50 // pred_region
          %314 = vst [vmem:[%s302] sm:$0xff] 0.0
          %315 = vst [vmem:[%s302 + $0x8] sm:$0xff] 0.0
          %316 = vst [vmem:[%s302 + $0x10] sm:$0xff] 0.0
          %317 = vst [vmem:[%s302 + $0x18] sm:$0xff] 0.0
          %318 = vst [vmem:[%s302 + $0x20] sm:$0xff] 0.0
          %319 = vst [vmem:[%s302 + $0x28] sm:$0xff] 0.0
          %320 = vst [vmem:[%s302 + $0x30] sm:$0xff] 0.0
          %321 = vst [vmem:[%s302 + $0x38] sm:$0xff] 0.0
        $region67: #{_lambda_.1} parent=50 // pred_fallthru
          _
        %v322 = vld [vmem:[%s302] sm:$0xff]
        %v323 = vld [vmem:[%s302 + $0x8] sm:$0xff]
        %v324 = vld [vmem:[%s302 + $0x10] sm:$0xff]
        %v325 = vld [vmem:[%s302 + $0x18] sm:$0xff]
        %v326 = vld [vmem:[%s302 + $0x20] sm:$0xff]
        %v327 = vld [vmem:[%s302 + $0x28] sm:$0xff]
        %v328 = vld [vmem:[%s302 + $0x30] sm:$0xff]
        %v329 = vld [vmem:[%s302 + $0x38] sm:$0xff]
        %v330 = vld [vmem:[%s253] sm:$0xff]
        %v331 = vld [vmem:[%s253 + $0x8] sm:$0xff]
        %v332 = vld [vmem:[%s253 + $0x10] sm:$0xff]
        %v333 = vld [vmem:[%s253 + $0x18] sm:$0xff]
        %v334 = vld [vmem:[%s261] sm:$0xff]
        %v335 = vld [vmem:[%s261 + $0x8] sm:$0xff]
        %v336 = vld [vmem:[%s261 + $0x10] sm:$0xff]
        %v337 = vld [vmem:[%s261 + $0x18] sm:$0xff]
        %v338 = vld [vmem:[%s261 + $0x20] sm:$0xff]
        %v339 = vld [vmem:[%s261 + $0x28] sm:$0xff]
        %v340 = vld [vmem:[%s261 + $0x30] sm:$0xff]
        %v341 = vld [vmem:[%s261 + $0x38] sm:$0xff]
        %v342 = vld [vmem:[%s261 + $0x40] sm:$0xff]
        %v343 = vld [vmem:[%s261 + $0x48] sm:$0xff]
        %v344 = vld [vmem:[%s261 + $0x50] sm:$0xff]
        %v345 = vld [vmem:[%s261 + $0x58] sm:$0xff]
        %v346 = vld [vmem:[%s261 + $0x60] sm:$0xff]
        %v347 = vld [vmem:[%s261 + $0x68] sm:$0xff]
        %v348 = vld [vmem:[%s261 + $0x70] sm:$0xff]
        %v349 = vld [vmem:[%s261 + $0x78] sm:$0xff]
        %v350 = vld [vmem:[%s261 + $0x80] sm:$0xff]
        %v351 = vld [vmem:[%s261 + $0x88] sm:$0xff]
        %v352 = vld [vmem:[%s261 + $0x90] sm:$0xff]
        %v353 = vld [vmem:[%s261 + $0x98] sm:$0xff]
        %v354 = vld [vmem:[%s261 + $0xa0] sm:$0xff]
        %v355 = vld [vmem:[%s261 + $0xa8] sm:$0xff]
        %v356 = vld [vmem:[%s261 + $0xb0] sm:$0xff]
        %v357 = vld [vmem:[%s261 + $0xb8] sm:$0xff]
        %v358 = vld [vmem:[%s261 + $0xc0] sm:$0xff]
        %v359 = vld [vmem:[%s261 + $0xc8] sm:$0xff]
        %v360 = vld [vmem:[%s261 + $0xd0] sm:$0xff]
        %v361 = vld [vmem:[%s261 + $0xd8] sm:$0xff]
        %v362 = vld [vmem:[%s261 + $0xe0] sm:$0xff]
        %v363 = vld [vmem:[%s261 + $0xe8] sm:$0xff]
        %v364 = vld [vmem:[%s261 + $0xf0] sm:$0xff]
        %v365 = vld [vmem:[%s261 + $0xf8] sm:$0xff]
        %v366 = vld [vmem:[%s261 + $0x100] sm:$0xff]
        %v367 = vld [vmem:[%s261 + $0x108] sm:$0xff]
        %v368 = vld [vmem:[%s261 + $0x110] sm:$0xff]
        %v369 = vld [vmem:[%s261 + $0x118] sm:$0xff]
        %v370 = vld [vmem:[%s261 + $0x120] sm:$0xff]
        %v371 = vld [vmem:[%s261 + $0x128] sm:$0xff]
        %v372 = vld [vmem:[%s261 + $0x130] sm:$0xff]
        %v373 = vld [vmem:[%s261 + $0x138] sm:$0xff]
        %v374 = vld [vmem:[%s261 + $0x140] sm:$0xff]
        %v375 = vld [vmem:[%s261 + $0x148] sm:$0xff]
        %v376 = vld [vmem:[%s261 + $0x150] sm:$0xff]
        %v377 = vld [vmem:[%s261 + $0x158] sm:$0xff]
        %v378 = vld [vmem:[%s261 + $0x160] sm:$0xff]
        %v379 = vld [vmem:[%s261 + $0x168] sm:$0xff]
        %v380 = vld [vmem:[%s261 + $0x170] sm:$0xff]
        %v381 = vld [vmem:[%s261 + $0x178] sm:$0xff]
        %v382 = vld [vmem:[%s261 + $0x180] sm:$0xff]
        %v383 = vld [vmem:[%s261 + $0x188] sm:$0xff]
        %v384 = vld [vmem:[%s261 + $0x190] sm:$0xff]
        %v385 = vld [vmem:[%s261 + $0x198] sm:$0xff]
        %v386 = vld [vmem:[%s261 + $0x1a0] sm:$0xff]
        %v387 = vld [vmem:[%s261 + $0x1a8] sm:$0xff]
        %v388 = vld [vmem:[%s261 + $0x1b0] sm:$0xff]
        %v389 = vld [vmem:[%s261 + $0x1b8] sm:$0xff]
        %v390 = vld [vmem:[%s261 + $0x1c0] sm:$0xff]
        %v391 = vld [vmem:[%s261 + $0x1c8] sm:$0xff]
        %v392 = vld [vmem:[%s261 + $0x1d0] sm:$0xff]
        %v393 = vld [vmem:[%s261 + $0x1d8] sm:$0xff]
        %v394 = vld [vmem:[%s261 + $0x1e0] sm:$0xff]
        %v395 = vld [vmem:[%s261 + $0x1e8] sm:$0xff]
        %v396 = vld [vmem:[%s261 + $0x1f0] sm:$0xff]
        %v397 = vld [vmem:[%s261 + $0x1f8] sm:$0xff]
        %v398 = vld [vmem:[%s261 + $0x200] sm:$0xff]
        %v399 = vld [vmem:[%s261 + $0x208] sm:$0xff]
        %v400 = vld [vmem:[%s261 + $0x210] sm:$0xff]
        %v401 = vld [vmem:[%s261 + $0x218] sm:$0xff]
        %v402 = vld [vmem:[%s261 + $0x220] sm:$0xff]
        %v403 = vld [vmem:[%s261 + $0x228] sm:$0xff]
        %v404 = vld [vmem:[%s261 + $0x230] sm:$0xff]
        %v405 = vld [vmem:[%s261 + $0x238] sm:$0xff]
        %v406 = vld [vmem:[%s261 + $0x240] sm:$0xff]
        %v407 = vld [vmem:[%s261 + $0x248] sm:$0xff]
        %v408 = vld [vmem:[%s261 + $0x250] sm:$0xff]
        %v409 = vld [vmem:[%s261 + $0x258] sm:$0xff]
        %v410 = vld [vmem:[%s261 + $0x260] sm:$0xff]
        %v411 = vld [vmem:[%s261 + $0x268] sm:$0xff]
        %v412 = vld [vmem:[%s261 + $0x270] sm:$0xff]
        %v413 = vld [vmem:[%s261 + $0x278] sm:$0xff]
        %v414 = vld [vmem:[%s261 + $0x280] sm:$0xff]
        %v415 = vld [vmem:[%s261 + $0x288] sm:$0xff]
        %v416 = vld [vmem:[%s261 + $0x290] sm:$0xff]
        %v417 = vld [vmem:[%s261 + $0x298] sm:$0xff]
        %v418 = vld [vmem:[%s261 + $0x2a0] sm:$0xff]
        %v419 = vld [vmem:[%s261 + $0x2a8] sm:$0xff]
        %v420 = vld [vmem:[%s261 + $0x2b0] sm:$0xff]
        %v421 = vld [vmem:[%s261 + $0x2b8] sm:$0xff]
        %v422 = vld [vmem:[%s261 + $0x2c0] sm:$0xff]
        %v423 = vld [vmem:[%s261 + $0x2c8] sm:$0xff]
        %v424 = vld [vmem:[%s261 + $0x2d0] sm:$0xff]
        %v425 = vld [vmem:[%s261 + $0x2d8] sm:$0xff]
        %v426 = vld [vmem:[%s261 + $0x2e0] sm:$0xff]
        %v427 = vld [vmem:[%s261 + $0x2e8] sm:$0xff]
        %v428 = vld [vmem:[%s261 + $0x2f0] sm:$0xff]
        %v429 = vld [vmem:[%s261 + $0x2f8] sm:$0xff]
        %v430 = vld [vmem:[%s261 + $0x300] sm:$0xff]
        %v431 = vld [vmem:[%s261 + $0x308] sm:$0xff]
        %v432 = vld [vmem:[%s261 + $0x310] sm:$0xff]
        %v433 = vld [vmem:[%s261 + $0x318] sm:$0xff]
        %v434 = vld [vmem:[%s261 + $0x320] sm:$0xff]
        %v435 = vld [vmem:[%s261 + $0x328] sm:$0xff]
        %v436 = vld [vmem:[%s261 + $0x330] sm:$0xff]
        %v437 = vld [vmem:[%s261 + $0x338] sm:$0xff]
        %v438 = vld [vmem:[%s261 + $0x340] sm:$0xff]
        %v439 = vld [vmem:[%s261 + $0x348] sm:$0xff]
        %v440 = vld [vmem:[%s261 + $0x350] sm:$0xff]
        %v441 = vld [vmem:[%s261 + $0x358] sm:$0xff]
        %v442 = vld [vmem:[%s261 + $0x360] sm:$0xff]
        %v443 = vld [vmem:[%s261 + $0x368] sm:$0xff]
        %v444 = vld [vmem:[%s261 + $0x370] sm:$0xff]
        %v445 = vld [vmem:[%s261 + $0x378] sm:$0xff]
        %v446 = vld [vmem:[%s261 + $0x380] sm:$0xff]
        %v447 = vld [vmem:[%s261 + $0x388] sm:$0xff]
        %v448 = vld [vmem:[%s261 + $0x390] sm:$0xff]
        %v449 = vld [vmem:[%s261 + $0x398] sm:$0xff]
        %v450 = vld [vmem:[%s261 + $0x3a0] sm:$0xff]
        %v451 = vld [vmem:[%s261 + $0x3a8] sm:$0xff]
        %v452 = vld [vmem:[%s261 + $0x3b0] sm:$0xff]
        %v453 = vld [vmem:[%s261 + $0x3b8] sm:$0xff]
        %v454 = vld [vmem:[%s261 + $0x3c0] sm:$0xff]
        %v455 = vld [vmem:[%s261 + $0x3c8] sm:$0xff]
        %v456 = vld [vmem:[%s261 + $0x3d0] sm:$0xff]
        %v457 = vld [vmem:[%s261 + $0x3d8] sm:$0xff]
        %v458 = vld [vmem:[%s261 + $0x3e0] sm:$0xff]
        %v459 = vld [vmem:[%s261 + $0x3e8] sm:$0xff]
        %v460 = vld [vmem:[%s261 + $0x3f0] sm:$0xff]
        %v461 = vld [vmem:[%s261 + $0x3f8] sm:$0xff]
        %v466 = vunpack.c.l.b16 %v330
        %v467 = vunpack.c.h.b16 %v330
        %v468 = vunpack.c.l.b16 %v331
        %v469 = vunpack.c.h.b16 %v331
        %v470 = vunpack.c.l.b16 %v332
        %v471 = vunpack.c.h.b16 %v332
        %v472 = vunpack.c.l.b16 %v333
        %v473 = vunpack.c.h.b16 %v333
        %v474 = vpack.c.b16 %v470, %v466
        %v475 = vpack.c.b16 %v471, %v467
        %v476 = vpack.c.b16 %v472, %v468
        %v477 = vpack.c.b16 %v473, %v469
        %v610 = vunpack.c.l.b16 %v334
        %v611 = vunpack.c.h.b16 %v334
        %v612 = vunpack.c.l.b16 %v335
        %v613 = vunpack.c.h.b16 %v335
        %v614 = vunpack.c.l.b16 %v336
        %v615 = vunpack.c.h.b16 %v336
        %v616 = vunpack.c.l.b16 %v337
        %v617 = vunpack.c.h.b16 %v337
        %v618 = vunpack.c.l.b16 %v338
        %v619 = vunpack.c.h.b16 %v338
        %v620 = vunpack.c.l.b16 %v339
        %v621 = vunpack.c.h.b16 %v339
        %v622 = vunpack.c.l.b16 %v340
        %v623 = vunpack.c.h.b16 %v340
        %v624 = vunpack.c.l.b16 %v341
        %v625 = vunpack.c.h.b16 %v341
        %v626 = vunpack.c.l.b16 %v342
        %v627 = vunpack.c.h.b16 %v342
        %v628 = vunpack.c.l.b16 %v343
        %v629 = vunpack.c.h.b16 %v343
        %v630 = vunpack.c.l.b16 %v344
        %v631 = vunpack.c.h.b16 %v344
        %v632 = vunpack.c.l.b16 %v345
        %v633 = vunpack.c.h.b16 %v345
        %v634 = vunpack.c.l.b16 %v346
        %v635 = vunpack.c.h.b16 %v346
        %v636 = vunpack.c.l.b16 %v347
        %v637 = vunpack.c.h.b16 %v347
        %v638 = vunpack.c.l.b16 %v348
        %v639 = vunpack.c.h.b16 %v348
        %v640 = vunpack.c.l.b16 %v349
        %v641 = vunpack.c.h.b16 %v349
        %v642 = vunpack.c.l.b16 %v350
        %v643 = vunpack.c.h.b16 %v350
        %v644 = vunpack.c.l.b16 %v351
        %v645 = vunpack.c.h.b16 %v351
        %v646 = vunpack.c.l.b16 %v352
        %v647 = vunpack.c.h.b16 %v352
        %v648 = vunpack.c.l.b16 %v353
        %v649 = vunpack.c.h.b16 %v353
        %v650 = vunpack.c.l.b16 %v354
        %v651 = vunpack.c.h.b16 %v354
        %v652 = vunpack.c.l.b16 %v355
        %v653 = vunpack.c.h.b16 %v355
        %v654 = vunpack.c.l.b16 %v356
        %v655 = vunpack.c.h.b16 %v356
        %v656 = vunpack.c.l.b16 %v357
        %v657 = vunpack.c.h.b16 %v357
        %v658 = vunpack.c.l.b16 %v358
        %v659 = vunpack.c.h.b16 %v358
        %v660 = vunpack.c.l.b16 %v359
        %v661 = vunpack.c.h.b16 %v359
        %v662 = vunpack.c.l.b16 %v360
        %v663 = vunpack.c.h.b16 %v360
        %v664 = vunpack.c.l.b16 %v361
        %v665 = vunpack.c.h.b16 %v361
        %v666 = vunpack.c.l.b16 %v362
        %v667 = vunpack.c.h.b16 %v362
        %v668 = vunpack.c.l.b16 %v363
        %v669 = vunpack.c.h.b16 %v363
        %v670 = vunpack.c.l.b16 %v364
        %v671 = vunpack.c.h.b16 %v364
        %v672 = vunpack.c.l.b16 %v365
        %v673 = vunpack.c.h.b16 %v365
        %v674 = vunpack.c.l.b16 %v366
        %v675 = vunpack.c.h.b16 %v366
        %v676 = vunpack.c.l.b16 %v367
        %v677 = vunpack.c.h.b16 %v367
        %v678 = vunpack.c.l.b16 %v368
        %v679 = vunpack.c.h.b16 %v368
        %v680 = vunpack.c.l.b16 %v369
        %v681 = vunpack.c.h.b16 %v369
        %v682 = vunpack.c.l.b16 %v370
        %v683 = vunpack.c.h.b16 %v370
        %v684 = vunpack.c.l.b16 %v371
        %v685 = vunpack.c.h.b16 %v371
        %v686 = vunpack.c.l.b16 %v372
        %v687 = vunpack.c.h.b16 %v372
        %v688 = vunpack.c.l.b16 %v373
        %v689 = vunpack.c.h.b16 %v373
        %v690 = vunpack.c.l.b16 %v374
        %v691 = vunpack.c.h.b16 %v374
        %v692 = vunpack.c.l.b16 %v375
        %v693 = vunpack.c.h.b16 %v375
        %v694 = vunpack.c.l.b16 %v376
        %v695 = vunpack.c.h.b16 %v376
        %v696 = vunpack.c.l.b16 %v377
        %v697 = vunpack.c.h.b16 %v377
        %v698 = vunpack.c.l.b16 %v378
        %v699 = vunpack.c.h.b16 %v378
        %v700 = vunpack.c.l.b16 %v379
        %v701 = vunpack.c.h.b16 %v379
        %v702 = vunpack.c.l.b16 %v380
        %v703 = vunpack.c.h.b16 %v380
        %v704 = vunpack.c.l.b16 %v381
        %v705 = vunpack.c.h.b16 %v381
        %v706 = vunpack.c.l.b16 %v382
        %v707 = vunpack.c.h.b16 %v382
        %v708 = vunpack.c.l.b16 %v383
        %v709 = vunpack.c.h.b16 %v383
        %v710 = vunpack.c.l.b16 %v384
        %v711 = vunpack.c.h.b16 %v384
        %v712 = vunpack.c.l.b16 %v385
        %v713 = vunpack.c.h.b16 %v385
        %v714 = vunpack.c.l.b16 %v386
        %v715 = vunpack.c.h.b16 %v386
        %v716 = vunpack.c.l.b16 %v387
        %v717 = vunpack.c.h.b16 %v387
        %v718 = vunpack.c.l.b16 %v388
        %v719 = vunpack.c.h.b16 %v388
        %v720 = vunpack.c.l.b16 %v389
        %v721 = vunpack.c.h.b16 %v389
        %v722 = vunpack.c.l.b16 %v390
        %v723 = vunpack.c.h.b16 %v390
        %v724 = vunpack.c.l.b16 %v391
        %v725 = vunpack.c.h.b16 %v391
        %v726 = vunpack.c.l.b16 %v392
        %v727 = vunpack.c.h.b16 %v392
        %v728 = vunpack.c.l.b16 %v393
        %v729 = vunpack.c.h.b16 %v393
        %v730 = vunpack.c.l.b16 %v394
        %v731 = vunpack.c.h.b16 %v394
        %v732 = vunpack.c.l.b16 %v395
        %v733 = vunpack.c.h.b16 %v395
        %v734 = vunpack.c.l.b16 %v396
        %v735 = vunpack.c.h.b16 %v396
        %v736 = vunpack.c.l.b16 %v397
        %v737 = vunpack.c.h.b16 %v397
        %v738 = vunpack.c.l.b16 %v398
        %v739 = vunpack.c.h.b16 %v398
        %v740 = vunpack.c.l.b16 %v399
        %v741 = vunpack.c.h.b16 %v399
        %v742 = vunpack.c.l.b16 %v400
        %v743 = vunpack.c.h.b16 %v400
        %v744 = vunpack.c.l.b16 %v401
        %v745 = vunpack.c.h.b16 %v401
        %v746 = vunpack.c.l.b16 %v402
        %v747 = vunpack.c.h.b16 %v402
        %v748 = vunpack.c.l.b16 %v403
        %v749 = vunpack.c.h.b16 %v403
        %v750 = vunpack.c.l.b16 %v404
        %v751 = vunpack.c.h.b16 %v404
        %v752 = vunpack.c.l.b16 %v405
        %v753 = vunpack.c.h.b16 %v405
        %v754 = vunpack.c.l.b16 %v406
        %v755 = vunpack.c.h.b16 %v406
        %v756 = vunpack.c.l.b16 %v407
        %v757 = vunpack.c.h.b16 %v407
        %v758 = vunpack.c.l.b16 %v408
        %v759 = vunpack.c.h.b16 %v408
        %v760 = vunpack.c.l.b16 %v409
        %v761 = vunpack.c.h.b16 %v409
        %v762 = vunpack.c.l.b16 %v410
        %v763 = vunpack.c.h.b16 %v410
        %v764 = vunpack.c.l.b16 %v411
        %v765 = vunpack.c.h.b16 %v411
        %v766 = vunpack.c.l.b16 %v412
        %v767 = vunpack.c.h.b16 %v412
        %v768 = vunpack.c.l.b16 %v413
        %v769 = vunpack.c.h.b16 %v413
        %v770 = vunpack.c.l.b16 %v414
        %v771 = vunpack.c.h.b16 %v414
        %v772 = vunpack.c.l.b16 %v415
        %v773 = vunpack.c.h.b16 %v415
        %v774 = vunpack.c.l.b16 %v416
        %v775 = vunpack.c.h.b16 %v416
        %v776 = vunpack.c.l.b16 %v417
        %v777 = vunpack.c.h.b16 %v417
        %v778 = vunpack.c.l.b16 %v418
        %v779 = vunpack.c.h.b16 %v418
        %v780 = vunpack.c.l.b16 %v419
        %v781 = vunpack.c.h.b16 %v419
        %v782 = vunpack.c.l.b16 %v420
        %v783 = vunpack.c.h.b16 %v420
        %v784 = vunpack.c.l.b16 %v421
        %v785 = vunpack.c.h.b16 %v421
        %v786 = vunpack.c.l.b16 %v422
        %v787 = vunpack.c.h.b16 %v422
        %v788 = vunpack.c.l.b16 %v423
        %v789 = vunpack.c.h.b16 %v423
        %v790 = vunpack.c.l.b16 %v424
        %v791 = vunpack.c.h.b16 %v424
        %v792 = vunpack.c.l.b16 %v425
        %v793 = vunpack.c.h.b16 %v425
        %v794 = vunpack.c.l.b16 %v426
        %v795 = vunpack.c.h.b16 %v426
        %v796 = vunpack.c.l.b16 %v427
        %v797 = vunpack.c.h.b16 %v427
        %v798 = vunpack.c.l.b16 %v428
        %v799 = vunpack.c.h.b16 %v428
        %v800 = vunpack.c.l.b16 %v429
        %v801 = vunpack.c.h.b16 %v429
        %v802 = vunpack.c.l.b16 %v430
        %v803 = vunpack.c.h.b16 %v430
        %v804 = vunpack.c.l.b16 %v431
        %v805 = vunpack.c.h.b16 %v431
        %v806 = vunpack.c.l.b16 %v432
        %v807 = vunpack.c.h.b16 %v432
        %v808 = vunpack.c.l.b16 %v433
        %v809 = vunpack.c.h.b16 %v433
        %v810 = vunpack.c.l.b16 %v434
        %v811 = vunpack.c.h.b16 %v434
        %v812 = vunpack.c.l.b16 %v435
        %v813 = vunpack.c.h.b16 %v435
        %v814 = vunpack.c.l.b16 %v436
        %v815 = vunpack.c.h.b16 %v436
        %v816 = vunpack.c.l.b16 %v437
        %v817 = vunpack.c.h.b16 %v437
        %v818 = vunpack.c.l.b16 %v438
        %v819 = vunpack.c.h.b16 %v438
        %v820 = vunpack.c.l.b16 %v439
        %v821 = vunpack.c.h.b16 %v439
        %v822 = vunpack.c.l.b16 %v440
        %v823 = vunpack.c.h.b16 %v440
        %v824 = vunpack.c.l.b16 %v441
        %v825 = vunpack.c.h.b16 %v441
        %v826 = vunpack.c.l.b16 %v442
        %v827 = vunpack.c.h.b16 %v442
        %v828 = vunpack.c.l.b16 %v443
        %v829 = vunpack.c.h.b16 %v443
        %v830 = vunpack.c.l.b16 %v444
        %v831 = vunpack.c.h.b16 %v444
        %v832 = vunpack.c.l.b16 %v445
        %v833 = vunpack.c.h.b16 %v445
        %v834 = vunpack.c.l.b16 %v446
        %v835 = vunpack.c.h.b16 %v446
        %v836 = vunpack.c.l.b16 %v447
        %v837 = vunpack.c.h.b16 %v447
        %v838 = vunpack.c.l.b16 %v448
        %v839 = vunpack.c.h.b16 %v448
        %v840 = vunpack.c.l.b16 %v449
        %v841 = vunpack.c.h.b16 %v449
        %v842 = vunpack.c.l.b16 %v450
        %v843 = vunpack.c.h.b16 %v450
        %v844 = vunpack.c.l.b16 %v451
        %v845 = vunpack.c.h.b16 %v451
        %v846 = vunpack.c.l.b16 %v452
        %v847 = vunpack.c.h.b16 %v452
        %v848 = vunpack.c.l.b16 %v453
        %v849 = vunpack.c.h.b16 %v453
        %v850 = vunpack.c.l.b16 %v454
        %v851 = vunpack.c.h.b16 %v454
        %v852 = vunpack.c.l.b16 %v455
        %v853 = vunpack.c.h.b16 %v455
        %v854 = vunpack.c.l.b16 %v456
        %v855 = vunpack.c.h.b16 %v456
        %v856 = vunpack.c.l.b16 %v457
        %v857 = vunpack.c.h.b16 %v457
        %v858 = vunpack.c.l.b16 %v458
        %v859 = vunpack.c.h.b16 %v458
        %v860 = vunpack.c.l.b16 %v459
        %v861 = vunpack.c.h.b16 %v459
        %v862 = vunpack.c.l.b16 %v460
        %v863 = vunpack.c.h.b16 %v460
        %v864 = vunpack.c.l.b16 %v461
        %v865 = vunpack.c.h.b16 %v461
        %v866 = vpack.c.b16 %v614, %v610
        %v867 = vpack.c.b16 %v615, %v611
        %v868 = vpack.c.b16 %v616, %v612
        %v869 = vpack.c.b16 %v617, %v613
        %v870 = vpack.c.b16 %v622, %v618
        %v871 = vpack.c.b16 %v623, %v619
        %v872 = vpack.c.b16 %v624, %v620
        %v873 = vpack.c.b16 %v625, %v621
        %v874 = vpack.c.b16 %v630, %v626
        %v875 = vpack.c.b16 %v631, %v627
        %v876 = vpack.c.b16 %v632, %v628
        %v877 = vpack.c.b16 %v633, %v629
        %v878 = vpack.c.b16 %v638, %v634
        %v879 = vpack.c.b16 %v639, %v635
        %v880 = vpack.c.b16 %v640, %v636
        %v881 = vpack.c.b16 %v641, %v637
        %v882 = vpack.c.b16 %v646, %v642
        %v883 = vpack.c.b16 %v647, %v643
        %v884 = vpack.c.b16 %v648, %v644
        %v885 = vpack.c.b16 %v649, %v645
        %v886 = vpack.c.b16 %v654, %v650
        %v887 = vpack.c.b16 %v655, %v651
        %v888 = vpack.c.b16 %v656, %v652
        %v889 = vpack.c.b16 %v657, %v653
        %v890 = vpack.c.b16 %v662, %v658
        %v891 = vpack.c.b16 %v663, %v659
        %v892 = vpack.c.b16 %v664, %v660
        %v893 = vpack.c.b16 %v665, %v661
        %v894 = vpack.c.b16 %v670, %v666
        %v895 = vpack.c.b16 %v671, %v667
        %v896 = vpack.c.b16 %v672, %v668
        %v897 = vpack.c.b16 %v673, %v669
        %v898 = vpack.c.b16 %v678, %v674
        %v899 = vpack.c.b16 %v679, %v675
        %v900 = vpack.c.b16 %v680, %v676
        %v901 = vpack.c.b16 %v681, %v677
        %v902 = vpack.c.b16 %v686, %v682
        %v903 = vpack.c.b16 %v687, %v683
        %v904 = vpack.c.b16 %v688, %v684
        %v905 = vpack.c.b16 %v689, %v685
        %v906 = vpack.c.b16 %v694, %v690
        %v907 = vpack.c.b16 %v695, %v691
        %v908 = vpack.c.b16 %v696, %v692
        %v909 = vpack.c.b16 %v697, %v693
        %v910 = vpack.c.b16 %v702, %v698
        %v911 = vpack.c.b16 %v703, %v699
        %v912 = vpack.c.b16 %v704, %v700
        %v913 = vpack.c.b16 %v705, %v701
        %v914 = vpack.c.b16 %v710, %v706
        %v915 = vpack.c.b16 %v711, %v707
        %v916 = vpack.c.b16 %v712, %v708
        %v917 = vpack.c.b16 %v713, %v709
        %v918 = vpack.c.b16 %v718, %v714
        %v919 = vpack.c.b16 %v719, %v715
        %v920 = vpack.c.b16 %v720, %v716
        %v921 = vpack.c.b16 %v721, %v717
        %v922 = vpack.c.b16 %v726, %v722
        %v923 = vpack.c.b16 %v727, %v723
        %v924 = vpack.c.b16 %v728, %v724
        %v925 = vpack.c.b16 %v729, %v725
        %v926 = vpack.c.b16 %v734, %v730
        %v927 = vpack.c.b16 %v735, %v731
        %v928 = vpack.c.b16 %v736, %v732
        %v929 = vpack.c.b16 %v737, %v733
        %v930 = vpack.c.b16 %v742, %v738
        %v931 = vpack.c.b16 %v743, %v739
        %v932 = vpack.c.b16 %v744, %v740
        %v933 = vpack.c.b16 %v745, %v741
        %v934 = vpack.c.b16 %v750, %v746
        %v935 = vpack.c.b16 %v751, %v747
        %v936 = vpack.c.b16 %v752, %v748
        %v937 = vpack.c.b16 %v753, %v749
        %v938 = vpack.c.b16 %v758, %v754
        %v939 = vpack.c.b16 %v759, %v755
        %v940 = vpack.c.b16 %v760, %v756
        %v941 = vpack.c.b16 %v761, %v757
        %v942 = vpack.c.b16 %v766, %v762
        %v943 = vpack.c.b16 %v767, %v763
        %v944 = vpack.c.b16 %v768, %v764
        %v945 = vpack.c.b16 %v769, %v765
        %v946 = vpack.c.b16 %v774, %v770
        %v947 = vpack.c.b16 %v775, %v771
        %v948 = vpack.c.b16 %v776, %v772
        %v949 = vpack.c.b16 %v777, %v773
        %v950 = vpack.c.b16 %v782, %v778
        %v951 = vpack.c.b16 %v783, %v779
        %v952 = vpack.c.b16 %v784, %v780
        %v953 = vpack.c.b16 %v785, %v781
        %v954 = vpack.c.b16 %v790, %v786
        %v955 = vpack.c.b16 %v791, %v787
        %v956 = vpack.c.b16 %v792, %v788
        %v957 = vpack.c.b16 %v793, %v789
        %v958 = vpack.c.b16 %v798, %v794
        %v959 = vpack.c.b16 %v799, %v795
        %v960 = vpack.c.b16 %v800, %v796
        %v961 = vpack.c.b16 %v801, %v797
        %v962 = vpack.c.b16 %v806, %v802
        %v963 = vpack.c.b16 %v807, %v803
        %v964 = vpack.c.b16 %v808, %v804
        %v965 = vpack.c.b16 %v809, %v805
        %v966 = vpack.c.b16 %v814, %v810
        %v967 = vpack.c.b16 %v815, %v811
        %v968 = vpack.c.b16 %v816, %v812
        %v969 = vpack.c.b16 %v817, %v813
        %v970 = vpack.c.b16 %v822, %v818
        %v971 = vpack.c.b16 %v823, %v819
        %v972 = vpack.c.b16 %v824, %v820
        %v973 = vpack.c.b16 %v825, %v821
        %v974 = vpack.c.b16 %v830, %v826
        %v975 = vpack.c.b16 %v831, %v827
        %v976 = vpack.c.b16 %v832, %v828
        %v977 = vpack.c.b16 %v833, %v829
        %v978 = vpack.c.b16 %v838, %v834
        %v979 = vpack.c.b16 %v839, %v835
        %v980 = vpack.c.b16 %v840, %v836
        %v981 = vpack.c.b16 %v841, %v837
        %v982 = vpack.c.b16 %v846, %v842
        %v983 = vpack.c.b16 %v847, %v843
        %v984 = vpack.c.b16 %v848, %v844
        %v985 = vpack.c.b16 %v849, %v845
        %v986 = vpack.c.b16 %v854, %v850
        %v987 = vpack.c.b16 %v855, %v851
        %v988 = vpack.c.b16 %v856, %v852
        %v989 = vpack.c.b16 %v857, %v853
        %v990 = vpack.c.b16 %v862, %v858
        %v991 = vpack.c.b16 %v863, %v859
        %v992 = vpack.c.b16 %v864, %v860
        %v993 = vpack.c.b16 %v865, %v861
        %1122 = vmatpush.bf16.msra.mxu0 %v894
        %1123 = vmatpush.bf16.msra.mxu0 %v890
        %1124 = vmatpush.bf16.msra.mxu0 %v886
        %1125 = vmatpush.bf16.msra.mxu0 %v882
        %1126 = vmatpush.bf16.msra.mxu0 %v878
        %1127 = vmatpush.bf16.msra.mxu0 %v874
        %1128 = vmatpush.bf16.msra.mxu0 %v870
        %1129 = vmatpush.bf16.msra.mxu0 %v866
        %1130 = vmatmul.bf16.gmra.mxu0 %v474
        %v1131 = vpop.f32.mrf.mxu0
        %v1132 = vadd.f32 0.0, %v1131
        %v1133 = vpop.f32.mrf.mxu0
        %v1134 = vadd.f32 0.0, %v1133
        %1135 = vdwg.mxu0
        %1136 = vmatpush.bf16.msra.mxu0 %v926
        %1137 = vmatpush.bf16.msra.mxu0 %v922
        %1138 = vmatpush.bf16.msra.mxu0 %v918
        %1139 = vmatpush.bf16.msra.mxu0 %v914
        %1140 = vmatpush.bf16.msra.mxu0 %v910
        %1141 = vmatpush.bf16.msra.mxu0 %v906
        %1142 = vmatpush.bf16.msra.mxu0 %v902
        %1143 = vmatpush.bf16.msra.mxu0 %v898
        %1144 = vmatmul.bf16.gmra.mxu0 %v475
        %v1145 = vpop.f32.mrf.mxu0
        %v1146 = vadd.f32 %v1132, %v1145
        %v1147 = vpop.f32.mrf.mxu0
        %v1148 = vadd.f32 %v1134, %v1147
        %1149 = vdwg.mxu0
        %1150 = vmatpush.bf16.msra.mxu0 %v958
        %1151 = vmatpush.bf16.msra.mxu0 %v954
        %1152 = vmatpush.bf16.msra.mxu0 %v950
        %1153 = vmatpush.bf16.msra.mxu0 %v946
        %1154 = vmatpush.bf16.msra.mxu0 %v942
        %1155 = vmatpush.bf16.msra.mxu0 %v938
        %1156 = vmatpush.bf16.msra.mxu0 %v934
        %1157 = vmatpush.bf16.msra.mxu0 %v930
        %1158 = vmatmul.bf16.gmra.mxu0 %v476
        %v1159 = vpop.f32.mrf.mxu0
        %v1160 = vadd.f32 %v1146, %v1159
        %v1161 = vpop.f32.mrf.mxu0
        %v1162 = vadd.f32 %v1148, %v1161
        %1163 = vdwg.mxu0
        %1164 = vmatpush.bf16.msra.mxu0 %v990
        %1165 = vmatpush.bf16.msra.mxu0 %v986
        %1166 = vmatpush.bf16.msra.mxu0 %v982
        %1167 = vmatpush.bf16.msra.mxu0 %v978
        %1168 = vmatpush.bf16.msra.mxu0 %v974
        %1169 = vmatpush.bf16.msra.mxu0 %v970
        %1170 = vmatpush.bf16.msra.mxu0 %v966
        %1171 = vmatpush.bf16.msra.mxu0 %v962
        %1172 = vmatmul.bf16.gmra.mxu0 %v477
        %v1173 = vpop.f32.mrf.mxu0
        %v1174 = vadd.f32 %v1160, %v1173
        %v1175 = vpop.f32.mrf.mxu0
        %v1176 = vadd.f32 %v1162, %v1175
        %1177 = vdwg.mxu0
        %1178 = vmatpush.bf16.msra.mxu0 %v895
        %1179 = vmatpush.bf16.msra.mxu0 %v891
        %1180 = vmatpush.bf16.msra.mxu0 %v887
        %1181 = vmatpush.bf16.msra.mxu0 %v883
        %1182 = vmatpush.bf16.msra.mxu0 %v879
        %1183 = vmatpush.bf16.msra.mxu0 %v875
        %1184 = vmatpush.bf16.msra.mxu0 %v871
        %1185 = vmatpush.bf16.msra.mxu0 %v867
        %1186 = vmatmul.bf16.gmra.mxu0 %v474
        %v1187 = vpop.f32.mrf.mxu0
        %v1188 = vadd.f32 0.0, %v1187
        %v1189 = vpop.f32.mrf.mxu0
        %v1190 = vadd.f32 0.0, %v1189
        %1191 = vdwg.mxu0
        %1192 = vmatpush.bf16.msra.mxu0 %v927
        %1193 = vmatpush.bf16.msra.mxu0 %v923
        %1194 = vmatpush.bf16.msra.mxu0 %v919
        %1195 = vmatpush.bf16.msra.mxu0 %v915
        %1196 = vmatpush.bf16.msra.mxu0 %v911
        %1197 = vmatpush.bf16.msra.mxu0 %v907
        %1198 = vmatpush.bf16.msra.mxu0 %v903
        %1199 = vmatpush.bf16.msra.mxu0 %v899
        %1200 = vmatmul.bf16.gmra.mxu0 %v475
        %v1201 = vpop.f32.mrf.mxu0
        %v1202 = vadd.f32 %v1188, %v1201
        %v1203 = vpop.f32.mrf.mxu0
        %v1204 = vadd.f32 %v1190, %v1203
        %1205 = vdwg.mxu0
        %1206 = vmatpush.bf16.msra.mxu0 %v959
        %1207 = vmatpush.bf16.msra.mxu0 %v955
        %1208 = vmatpush.bf16.msra.mxu0 %v951
        %1209 = vmatpush.bf16.msra.mxu0 %v947
        %1210 = vmatpush.bf16.msra.mxu0 %v943
        %1211 = vmatpush.bf16.msra.mxu0 %v939
        %1212 = vmatpush.bf16.msra.mxu0 %v935
        %1213 = vmatpush.bf16.msra.mxu0 %v931
        %1214 = vmatmul.bf16.gmra.mxu0 %v476
        %v1215 = vpop.f32.mrf.mxu0
        %v1216 = vadd.f32 %v1202, %v1215
        %v1217 = vpop.f32.mrf.mxu0
        %v1218 = vadd.f32 %v1204, %v1217
        %1219 = vdwg.mxu0
        %1220 = vmatpush.bf16.msra.mxu0 %v991
        %1221 = vmatpush.bf16.msra.mxu0 %v987
        %1222 = vmatpush.bf16.msra.mxu0 %v983
        %1223 = vmatpush.bf16.msra.mxu0 %v979
        %1224 = vmatpush.bf16.msra.mxu0 %v975
        %1225 = vmatpush.bf16.msra.mxu0 %v971
        %1226 = vmatpush.bf16.msra.mxu0 %v967
        %1227 = vmatpush.bf16.msra.mxu0 %v963
        %1228 = vmatmul.bf16.gmra.mxu0 %v477
        %v1229 = vpop.f32.mrf.mxu0
        %v1230 = vadd.f32 %v1216, %v1229
        %v1231 = vpop.f32.mrf.mxu0
        %v1232 = vadd.f32 %v1218, %v1231
        %1233 = vdwg.mxu0
        %1234 = vmatpush.bf16.msra.mxu0 %v896
        %1235 = vmatpush.bf16.msra.mxu0 %v892
        %1236 = vmatpush.bf16.msra.mxu0 %v888
        %1237 = vmatpush.bf16.msra.mxu0 %v884
        %1238 = vmatpush.bf16.msra.mxu0 %v880
        %1239 = vmatpush.bf16.msra.mxu0 %v876
        %1240 = vmatpush.bf16.msra.mxu0 %v872
        %1241 = vmatpush.bf16.msra.mxu0 %v868
        %1242 = vmatmul.bf16.gmra.mxu0 %v474
        %v1243 = vpop.f32.mrf.mxu0
        %v1244 = vadd.f32 0.0, %v1243
        %v1245 = vpop.f32.mrf.mxu0
        %v1246 = vadd.f32 0.0, %v1245
        %1247 = vdwg.mxu0
        %1248 = vmatpush.bf16.msra.mxu0 %v928
        %1249 = vmatpush.bf16.msra.mxu0 %v924
        %1250 = vmatpush.bf16.msra.mxu0 %v920
        %1251 = vmatpush.bf16.msra.mxu0 %v916
        %1252 = vmatpush.bf16.msra.mxu0 %v912
        %1253 = vmatpush.bf16.msra.mxu0 %v908
        %1254 = vmatpush.bf16.msra.mxu0 %v904
        %1255 = vmatpush.bf16.msra.mxu0 %v900
        %1256 = vmatmul.bf16.gmra.mxu0 %v475
        %v1257 = vpop.f32.mrf.mxu0
        %v1258 = vadd.f32 %v1244, %v1257
        %v1259 = vpop.f32.mrf.mxu0
        %v1260 = vadd.f32 %v1246, %v1259
        %1261 = vdwg.mxu0
        %1262 = vmatpush.bf16.msra.mxu0 %v960
        %1263 = vmatpush.bf16.msra.mxu0 %v956
        %1264 = vmatpush.bf16.msra.mxu0 %v952
        %1265 = vmatpush.bf16.msra.mxu0 %v948
        %1266 = vmatpush.bf16.msra.mxu0 %v944
        %1267 = vmatpush.bf16.msra.mxu0 %v940
        %1268 = vmatpush.bf16.msra.mxu0 %v936
        %1269 = vmatpush.bf16.msra.mxu0 %v932
        %1270 = vmatmul.bf16.gmra.mxu0 %v476
        %v1271 = vpop.f32.mrf.mxu0
        %v1272 = vadd.f32 %v1258, %v1271
        %v1273 = vpop.f32.mrf.mxu0
        %v1274 = vadd.f32 %v1260, %v1273
        %1275 = vdwg.mxu0
        %1276 = vmatpush.bf16.msra.mxu0 %v992
        %1277 = vmatpush.bf16.msra.mxu0 %v988
        %1278 = vmatpush.bf16.msra.mxu0 %v984
        %1279 = vmatpush.bf16.msra.mxu0 %v980
        %1280 = vmatpush.bf16.msra.mxu0 %v976
        %1281 = vmatpush.bf16.msra.mxu0 %v972
        %1282 = vmatpush.bf16.msra.mxu0 %v968
        %1283 = vmatpush.bf16.msra.mxu0 %v964
        %1284 = vmatmul.bf16.gmra.mxu0 %v477
        %v1285 = vpop.f32.mrf.mxu0
        %v1286 = vadd.f32 %v1272, %v1285
        %v1287 = vpop.f32.mrf.mxu0
        %v1288 = vadd.f32 %v1274, %v1287
        %1289 = vdwg.mxu0
        %1290 = vmatpush.bf16.msra.mxu0 %v897
        %1291 = vmatpush.bf16.msra.mxu0 %v893
        %1292 = vmatpush.bf16.msra.mxu0 %v889
        %1293 = vmatpush.bf16.msra.mxu0 %v885
        %1294 = vmatpush.bf16.msra.mxu0 %v881
        %1295 = vmatpush.bf16.msra.mxu0 %v877
        %1296 = vmatpush.bf16.msra.mxu0 %v873
        %1297 = vmatpush.bf16.msra.mxu0 %v869
        %1298 = vmatmul.bf16.gmra.mxu0 %v474
        %v1299 = vpop.f32.mrf.mxu0
        %v1300 = vadd.f32 0.0, %v1299
        %v1301 = vpop.f32.mrf.mxu0
        %v1302 = vadd.f32 0.0, %v1301
        %1303 = vdwg.mxu0
        %1304 = vmatpush.bf16.msra.mxu0 %v929
        %1305 = vmatpush.bf16.msra.mxu0 %v925
        %1306 = vmatpush.bf16.msra.mxu0 %v921
        %1307 = vmatpush.bf16.msra.mxu0 %v917
        %1308 = vmatpush.bf16.msra.mxu0 %v913
        %1309 = vmatpush.bf16.msra.mxu0 %v909
        %1310 = vmatpush.bf16.msra.mxu0 %v905
        %1311 = vmatpush.bf16.msra.mxu0 %v901
        %1312 = vmatmul.bf16.gmra.mxu0 %v475
        %v1313 = vpop.f32.mrf.mxu0
        %v1314 = vadd.f32 %v1300, %v1313
        %v1315 = vpop.f32.mrf.mxu0
        %v1316 = vadd.f32 %v1302, %v1315
        %1317 = vdwg.mxu0
        %1318 = vmatpush.bf16.msra.mxu0 %v961
        %1319 = vmatpush.bf16.msra.mxu0 %v957
        %1320 = vmatpush.bf16.msra.mxu0 %v953
        %1321 = vmatpush.bf16.msra.mxu0 %v949
        %1322 = vmatpush.bf16.msra.mxu0 %v945
        %1323 = vmatpush.bf16.msra.mxu0 %v941
        %1324 = vmatpush.bf16.msra.mxu0 %v937
        %1325 = vmatpush.bf16.msra.mxu0 %v933
        %1326 = vmatmul.bf16.gmra.mxu0 %v476
        %v1327 = vpop.f32.mrf.mxu0
        %v1328 = vadd.f32 %v1314, %v1327
        %v1329 = vpop.f32.mrf.mxu0
        %v1330 = vadd.f32 %v1316, %v1329
        %1331 = vdwg.mxu0
        %1332 = vmatpush.bf16.msra.mxu0 %v993
        %1333 = vmatpush.bf16.msra.mxu0 %v989
        %1334 = vmatpush.bf16.msra.mxu0 %v985
        %1335 = vmatpush.bf16.msra.mxu0 %v981
        %1336 = vmatpush.bf16.msra.mxu0 %v977
        %1337 = vmatpush.bf16.msra.mxu0 %v973
        %1338 = vmatpush.bf16.msra.mxu0 %v969
        %1339 = vmatpush.bf16.msra.mxu0 %v965
        %1340 = vmatmul.bf16.gmra.mxu0 %v477
        %v1341 = vpop.f32.mrf.mxu0
        %v1342 = vadd.f32 %v1328, %v1341
        %v1343 = vpop.f32.mrf.mxu0
        %v1344 = vadd.f32 %v1330, %v1343
        %1345 = vdwg.mxu0
        %v1346 = vadd.f32 %v322, %v1174
        %v1347 = vadd.f32 %v323, %v1230
        %v1348 = vadd.f32 %v324, %v1286
        %v1349 = vadd.f32 %v325, %v1342
        %v1350 = vadd.f32 %v326, %v1176
        %v1351 = vadd.f32 %v327, %v1232
        %v1352 = vadd.f32 %v328, %v1288
        %v1353 = vadd.f32 %v329, %v1344
        %1354 = vst [vmem:[%s302] sm:$0xff] %v1346
        %1355 = vst [vmem:[%s302 + $0x8] sm:$0xff] %v1347
        %1356 = vst [vmem:[%s302 + $0x10] sm:$0xff] %v1348
        %1357 = vst [vmem:[%s302 + $0x18] sm:$0xff] %v1349
        %1358 = vst [vmem:[%s302 + $0x20] sm:$0xff] %v1350
        %1359 = vst [vmem:[%s302 + $0x28] sm:$0xff] %v1351
        %1360 = vst [vmem:[%s302 + $0x30] sm:$0xff] %v1352
        %1361 = vst [vmem:[%s302 + $0x38] sm:$0xff] %v1353
        %p1362 = scmp.eq.s32.totalorder %s27, 1
        // Predicated region
        $region68: #{_lambda_.1} parent=50 // pred_check
          %p1363 = pneg %p1362
        $region69: #{_lambda_.1} parent=50 // pred_check_branch
          %1365 = sbr.rel (%p1363) target = $region71
        $region70: #{_lambda_.1} parent=50 // pred_region
          %v1366 = vld [vmem:[%s302] sm:$0xff]
          %v1367 = vld [vmem:[%s302 + $0x8] sm:$0xff]
          %v1368 = vld [vmem:[%s302 + $0x10] sm:$0xff]
          %v1369 = vld [vmem:[%s302 + $0x18] sm:$0xff]
          %v1370 = vld [vmem:[%s302 + $0x20] sm:$0xff]
          %v1371 = vld [vmem:[%s302 + $0x28] sm:$0xff]
          %v1372 = vld [vmem:[%s302 + $0x30] sm:$0xff]
          %v1373 = vld [vmem:[%s302 + $0x38] sm:$0xff]
          %v1374 = vld [vmem:[%s271] sm:$0xf]
          %v1376 = vperm.slane %v1374, 0
          %v1377 = vperm.slane %v1374, 1
          %v1378 = vperm.slane %v1374, 2
          %v1379 = vperm.slane %v1374, 3
          %v1384 = vadd.f32 %v1366, %v1376
          %v1385 = vadd.f32 %v1367, %v1377
          %v1386 = vadd.f32 %v1368, %v1378
          %v1387 = vadd.f32 %v1369, %v1379
          %v1388 = vadd.f32 %v1370, %v1376
          %v1389 = vadd.f32 %v1371, %v1377
          %v1390 = vadd.f32 %v1372, %v1378
          %v1391 = vadd.f32 %v1373, %v1379
          %1392 = vst [vmem:[%s302] sm:$0xff] %v1384
          %1393 = vst [vmem:[%s302 + $0x8] sm:$0xff] %v1385
          %1394 = vst [vmem:[%s302 + $0x10] sm:$0xff] %v1386
          %1395 = vst [vmem:[%s302 + $0x18] sm:$0xff] %v1387
          %1396 = vst [vmem:[%s302 + $0x20] sm:$0xff] %v1388
          %1397 = vst [vmem:[%s302 + $0x28] sm:$0xff] %v1389
          %1398 = vst [vmem:[%s302 + $0x30] sm:$0xff] %v1390
          %1399 = vst [vmem:[%s302 + $0x38] sm:$0xff] %v1391
        $region71: #{_lambda_.1} parent=50 // pred_fallthru
          _
        %s1400 = sand.u32 %s131, 1
        %s1401 = sand.u32 %s131, 1
        %s1402 = smul.addr %s1401, 64
        %s1403 = scalar_lea.vmem [#allocation7], %s1402
        // Predicated region
        $region72: #{_lambda_.1} parent=50 // pred_check
          %p1404 = pneg %p141
        $region73: #{_lambda_.1} parent=50 // pred_check_branch
          %1406 = sbr.rel (%p1404) target = $region75
        $region74: #{_lambda_.1} parent=50 // pred_region
          %s1407 = smul.u32 2, %s25
          %s1408 = smul.u32 4, %s26
          %s1409 = smul.addr %s1407, 8
          %s1410 = sadd.s32 %s1408, %s1409
          %s1411 = smul.addr %s1410, 8
          %s1412 = scalar_lea.vmem %s3, %s1411
          // Predicated region
          $region76: #{_lambda_.1} parent=74 // pred_check
            _
          $region77: #{_lambda_.1} parent=74 // pred_check_branch
            %1414 = sbr.rel (0) target = $region79
          $region78: #{_lambda_.1} parent=74 // pred_region
            // Predicated region
            $region80: #{_lambda_.1} parent=78 // pred_check
              _
            $region81: #{_lambda_.1} parent=78 // pred_check_branch
              %1416 = sbr.rel (0) target = $region83
            $region82: #{_lambda_.1} parent=78 // pred_region
              loop: start=0, step=1, limit=1
              $region84: #{_lambda_.1} parent=82 // loop_pre_header
                _
              $region85: #{_lambda_.1} parent=82 // loop_header
                %s1418 = sphi 0, %s1422
                %p1419 = scmp.ge.s32.totalorder %s1418, 1
                %s1423 = sphi %s1403, %s1403
                %s1424 = sphi %s1412, %s1412
              $region86: #{_lambda_.1} parent=82 // loop_header_branch
                %1421 = sbr.rel (%p1419) target = $region90
              $region87: #{_lambda_.1} parent=82 // loop_body
                %v1425 = vld [vmem:[%s1423] sm:$0xff]
                %1426 = vst [vmem:[%s1424] sm:$0xff] %v1425
                %v1427 = vld [vmem:[%s1423 + $0x8] sm:$0xff]
                %1428 = vst [vmem:[%s1424 + $0x8] sm:$0xff] %v1427
                %v1429 = vld [vmem:[%s1423 + $0x10] sm:$0xff]
                %1430 = vst [vmem:[%s1424 + $0x10] sm:$0xff] %v1429
                %v1431 = vld [vmem:[%s1423 + $0x18] sm:$0xff]
                %1432 = vst [vmem:[%s1424 + $0x18] sm:$0xff] %v1431
                %v1433 = vld [vmem:[%s1423 + $0x20] sm:$0xff]
                %1434 = vst [vmem:[%s1424 + $0x40] sm:$0xff] %v1433
                %v1435 = vld [vmem:[%s1423 + $0x28] sm:$0xff]
                %1436 = vst [vmem:[%s1424 + $0x48] sm:$0xff] %v1435
                %v1437 = vld [vmem:[%s1423 + $0x30] sm:$0xff]
                %1438 = vst [vmem:[%s1424 + $0x50] sm:$0xff] %v1437
                %v1439 = vld [vmem:[%s1423 + $0x38] sm:$0xff]
                %1440 = vst [vmem:[%s1424 + $0x58] sm:$0xff] %v1439
              $region88: #{_lambda_.1} parent=82 // loop_footer
                %s1422 = sadd.s32 1, %s1418
              $region89: #{_lambda_.1} parent=82 // loop_footer_branch
                %1417 = sbr.rel target = $region85
              $region90: #{_lambda_.1} parent=82 // loop_exit
                _
            $region83: #{_lambda_.1} parent=78 // pred_fallthru
              _
            // Predicated region
            $region91: #{_lambda_.1} parent=78 // pred_check
              _
            $region92: #{_lambda_.1} parent=78 // pred_check_branch
              %1442 = sbr.rel target = $region94
            $region93: #{_lambda_.1} parent=78 // pred_region
              _
            $region94: #{_lambda_.1} parent=78 // pred_fallthru
              _
          $region79: #{_lambda_.1} parent=74 // pred_fallthru
            _
          %1443 = vnop
        $region75: #{_lambda_.1} parent=50 // pred_fallthru
          _
      $region51: #{_lambda_.1} parent=5 // pred_fallthru
        _
      %p1444 = scmp.le.s32.totalorder 2, %s15
      // Predicated region
      $region95: #{_lambda_.1} parent=5 // pred_check
        %p1445 = pneg %p1444
      $region96: #{_lambda_.1} parent=5 // pred_check_branch
        %1447 = sbr.rel (%p1445) target = $region98
      $region97: #{_lambda_.1} parent=5 // pred_region
        %s1448 = ssub.s32 %s15, 2
        // Predicated region
        $region99: #{_lambda_.1} parent=97 // pred_check
          %p1449 = pneg %p147
        $region100: #{_lambda_.1} parent=97 // pred_check_branch
          %1451 = sbr.rel (%p1449) target = $region102
        $region101: #{_lambda_.1} parent=97 // pred_region
          %s1452 = sand.u32 %s132, 1
          %s1453 = sand.u32 %s132, 1
          %s1454 = smul.addr %s1453, 64
          %s1455 = scalar_lea.vmem [#allocation7], %s1454
        $region102: #{_lambda_.1} parent=97 // pred_fallthru
          _
      $region98: #{_lambda_.1} parent=5 // pred_fallthru
        _
    $region6: #{_lambda_.1} parent=1 // loop_footer
      %s19 = sadd.s32 1, %s15
    $region7: #{_lambda_.1} parent=1 // loop_footer_branch
      %14 = sbr.rel target = $region3
    $region8: #{_lambda_.1} parent=1 // loop_exit
      _
    %1456 = vsyncpa [#allocation4], 1
    %s1457 = scalar_lea.sflag [#allocation4], 1
    %1458 = vsyncpa %s1457, 1
    %1459 = vsyncpa [#allocation6], 1
    %s1460 = scalar_lea.sflag [#allocation6], 1
    %1461 = vsyncpa %s1460, 1

</llo_original>
